<compile_context>
chip_gen: v7x
topology: tpu7x:2x2x1
jax: 0.10.0
libtpu: 0.0.40
codegen_flags: <defaults>
</compile_context>

<pallas_src>
import functools
import math

import jax
import jax.numpy as jnp
from jax.experimental import pallas as pl
from jax.experimental.pallas import tpu as pltpu


def _sinusoidal_kernel(inv_ref, colg_ref, out_ref, *, fold: int):
    # inv_ref : (1, fdim) f32   tile(cat(inv_freq, inv_freq), fold)
    # colg_ref: (1, fdim) f32   per-lane row-group offset g = lane // dim
    # out_ref : (tm, fdim) f32  each stored row holds `fold` original rows
    tm, fdim = out_ref.shape
    base = pl.program_id(0) * (tm * fold)                       # original-row base of block
    r = jax.lax.broadcasted_iota(jnp.int32, (tm, fdim), 0) * fold + base
    t = r.astype(jnp.float32) + colg_ref[...]                   # exact integers (< 2^24)
    out_ref[...] = t * inv_ref[...]                             # single f32 multiply -> lane-dense store


def sinusoidal_embeddings(x: jax.Array, inv_freq: jax.Array) -> jax.Array:
    """Mirror of SinusoidalEmbeddings.forward(x) -> (n, 2*len(inv_freq)) float32.

    x is used only for its shape (n = x.shape[-2]); the output is unbatched,
    matching the PyTorch module.
    """
    n = int(x.shape[-2])
    half = int(inv_freq.shape[0])
    dim = 2 * half

    # Fold factor so the stored lane width is a multiple of 128 (unmasked vst).
    f = 128 // math.gcd(dim, 128)
    fdim = f * dim

    # Resident per-lane vectors (constant index_map -> DMA'd once, stay in VMEM).
    inv_cat = jnp.concatenate([inv_freq, inv_freq]).astype(jnp.float32)       # (dim,)
    inv_tiled = jnp.tile(inv_cat, f).reshape(1, fdim)                         # (1, fdim)
    col_group = jnp.repeat(jnp.arange(f, dtype=jnp.float32), dim).reshape(1, fdim)

    # Pad n to a multiple of f; the wrapper slices the padding back off.
    n_pad = ((n + f - 1) // f) * f
    n_f = n_pad // f

    # Row tile: ~2 MiB per output block (double-buffered -> ~4 MiB), clamped to
    # [8, 8192]; force >= 4 grid steps for moderate/large n so the "parallel"
    # row axis can shard across both TensorCores on v7x.
    target_bytes = 2 * 1024 * 1024
    row_bytes = fdim * 4
    tm = max(8, min(8192, (target_bytes // row_bytes) // 8 * 8))
    if n_f > 1024:
        quarter = -(-n_f // 4)                      # ceil(n_f / 4)
        tm = min(tm, ((quarter + 7) // 8) * 8)
    if n_f <= tm:
        tm = n_f                                    # single full-array block (always legal)

    grid = (pl.cdiv(n_f, tm),)

    out_folded = pl.pallas_call(
        functools.partial(_sinusoidal_kernel, fold=f),
        out_shape=jax.ShapeDtypeStruct((n_f, fdim), jnp.float32),
        grid_spec=pltpu.PrefetchScalarGridSpec(
            num_scalar_prefetch=0,
            grid=grid,
            in_specs=[
                pl.BlockSpec((1, fdim), lambda i: (0, 0)),    # inv_tiled (resident)
                pl.BlockSpec((1, fdim), lambda i: (0, 0)),    # col_group (resident)
            ],
            out_specs=pl.BlockSpec((tm, fdim), lambda i: (i, 0)),
        ),
        compiler_params=pltpu.CompilerParams(
            dimension_semantics=("parallel",),
        ),
    )(inv_tiled, col_group)

    out = out_folded.reshape(n_pad, dim)            # row-major reshape: free
    if n_pad != n:
        out = out[:n]
    return out


def make_inv_freq(dim: int) -> jax.Array:
    # Deterministic "buffer" init, identical to the PyTorch __init__.
    return 1.0 / (10000.0 ** (jnp.arange(0, dim, 2, dtype=jnp.float32) / dim))


def _reference(x, inv_freq):
    n = x.shape[-2]
    t = jnp.arange(n, dtype=inv_freq.dtype)
    freqs = jnp.einsum("i,j->ij", t, inv_freq)
    return jnp.concatenate((freqs, freqs), axis=-1)


if __name__ == "__main__":
    key = jax.random.PRNGKey(0)

    # Small shapes consistent with the module: x is (batch, seq, hidden); n = seq.
    batch, seq, dim = 2, 8, 32
    x = jax.random.normal(key, (batch, seq, dim), dtype=jnp.float32)
    inv_freq = make_inv_freq(dim)
    out = jax.block_until_ready(sinusoidal_embeddings(x, inv_freq))
    ref = _reference(x, inv_freq)
    assert out.shape == (seq, dim), out.shape
    assert out.dtype == jnp.float32, out.dtype
    assert jnp.allclose(out, ref, atol=1e-6, rtol=1e-6), "mismatch vs reference (small)"

    # Gridded + folded + padded path (n not divisible by fold, partial last block,
    # multi-step grid for megacore sharding).
    seq2, dim2 = 4097, 64
    x2 = jnp.zeros((1, seq2, dim2), dtype=jnp.float32)
    inv_freq2 = make_inv_freq(dim2)
    out2 = jax.block_until_ready(sinusoidal_embeddings(x2, inv_freq2))
    ref2 = _reference(x2, inv_freq2)
    assert out2.shape == (seq2, dim2), out2.shape
    assert jnp.allclose(out2, ref2, atol=1e-5, rtol=1e-5), "mismatch vs reference (gridded)"

    # dim already lane-dense (fold factor == 1).
    seq3, dim3 = 64, 256
    x3 = jnp.zeros((seq3, dim3), dtype=jnp.float32)
    inv_freq3 = make_inv_freq(dim3)
    out3 = jax.block_until_ready(sinusoidal_embeddings(x3, inv_freq3))
    ref3 = _reference(x3, inv_freq3)
    assert out3.shape == (seq3, dim3), out3.shape
    assert jnp.allclose(out3, ref3, atol=1e-5, rtol=1e-5), "mismatch vs reference (f=1)"

    print("KERNEL_OK")
</pallas_src>

<mosaic_0001>
module attributes {stable_mosaic.version = 11 : i64} {
  func.func @_sinusoidal_kernel(%arg0: i32, %arg1: memref<1x128xf32, #tpu.memory_space<vmem>>, %arg2: memref<1x128xf32, #tpu.memory_space<vmem>>, %arg3: memref<2x128xf32, #tpu.memory_space<vmem>>) attributes {dimension_semantics = [#tpu.dimension_semantics<parallel>], iteration_bounds = array<i64: 1>, scalar_prefetch = 0 : i64, scratch_operands = 0 : i64, tpu.core_type = #tpu.core_type<tc>, window_params = [{pipeline_mode = #tpu.pipeline_mode<synchronous>, transform_indices = @transform_0, window_bounds = array<i64: 1, 128>}, {pipeline_mode = #tpu.pipeline_mode<synchronous>, transform_indices = @transform_1, window_bounds = array<i64: 1, 128>}, {transform_indices = @transform_2, window_bounds = array<i64: 2, 128>}]} {
    %c8_i32 = arith.constant 8 : i32
    %0 = arith.muli %arg0, %c8_i32 : i32
    %1 = tpu.iota {dimensions = array<i32: 0>} : vector<2x128xi32>
    %c4_i32 = arith.constant 4 : i32
    %2 = vector.broadcast %c4_i32 : i32 to vector<2x128xi32>
    %3 = arith.muli %1, %2 : vector<2x128xi32>
    %4 = vector.broadcast %0 : i32 to vector<2x128xi32>
    %5 = arith.addi %3, %4 : vector<2x128xi32>
    %6 = arith.sitofp %5 : vector<2x128xi32> to vector<2x128xf32>
    %c0 = arith.constant 0 : index
    %c0_0 = arith.constant 0 : index
    %7 = vector.load %arg2[%c0, %c0_0] : memref<1x128xf32, #tpu.memory_space<vmem>>, vector<1x128xf32>
    %8 = vector.broadcast %7 : vector<1x128xf32> to vector<2x128xf32>
    %9 = arith.addf %6, %8 : vector<2x128xf32>
    %c0_1 = arith.constant 0 : index
    %c0_2 = arith.constant 0 : index
    %10 = vector.load %arg1[%c0_1, %c0_2] : memref<1x128xf32, #tpu.memory_space<vmem>>, vector<1x128xf32>
    %11 = vector.broadcast %10 : vector<1x128xf32> to vector<2x128xf32>
    %12 = arith.mulf %9, %11 : vector<2x128xf32>
    %c0_3 = arith.constant 0 : index
    %c0_4 = arith.constant 0 : index
    %13 = vector.load %arg3[%c0_3, %c0_4] : memref<2x128xf32, #tpu.memory_space<vmem>>, vector<2x128xf32>
    tpu.vector_store %arg3[%c0_3, %c0_4], %12 {strides = array<i32>} : memref<2x128xf32, #tpu.memory_space<vmem>>, vector<2x128xf32>,
    return
  }
  func.func @transform_0(%arg0: i32) -> (i32, i32) {
    %c0_i32 = arith.constant 0 : i32
    %c0_i32_0 = arith.constant 0 : i32
    %c0_i32_1 = arith.constant 0 : i32
    return %c0_i32, %c0_i32_0 : i32, i32
  }
  func.func @transform_1(%arg0: i32) -> (i32, i32) {
    %c0_i32 = arith.constant 0 : i32
    %c0_i32_0 = arith.constant 0 : i32
    %c0_i32_1 = arith.constant 0 : i32
    return %c0_i32, %c0_i32_0 : i32, i32
  }
  func.func @transform_2(%arg0: i32) -> (i32, i32) {
    %c0_i32 = arith.constant 0 : i32
    %c0_i32_0 = arith.constant 0 : i32
    return %arg0, %c0_i32 : i32, i32
  }
}

</mosaic_0001>

<llo_original>
// kernel: tpu_custom_call.1
$region0: #{tpu_custom_call.1}
  #allocation0 [shape = 'u32[]', space=smem, size = 0x4, offset = 0x4, fixed_abs, tag = 'smem constant byte address 0x4 - core index']
  #allocation1 [shape = 'u32[144,128]{1,0:T(1,128)}', space=vmem, size = 0x12000, scoped, tag = 'internal scratch']
  %s0 = inlined_call_operand.hbm [shape: f32[1,128], index: 0, kind: input, shape index: {}]
  %s1 = inlined_call_operand.vmem [shape: f32[1,128], index: 1, kind: input, shape index: {}]
  %s2 = inlined_call_operand.hbm [shape: f32[2,128], index: 2, kind: output, shape index: {}]
  %s3 = sld [smem:[#allocation0]]
  $region22: #{tpu_custom_call.1} parent=0
    _
  %s5 = ssub.s32 1, %s3
  %s6 = scalar_select 0, %s5, %s3
  $region1: #{tpu_custom_call.1} parent=0
    #allocation2 [shape = 'u8[512]{0}', space=vmem, size = 0x400, scoped, tag = 'input window, operand 0, single buffered']
    #allocation3 [shape = 's32[1]{0}', space=sflag, size = 0x4, scoped, tag = 'scoped memory for tpu_custom_call.1']
    #allocation4 [shape = 's32[1]{0}', space=sflag, size = 0x4, scoped, tag = 'scoped memory for tpu_custom_call.1']
    #allocation5 [shape = 'u8[1024]{0}', space=vmem, size = 0x400, scoped, tag = 'output window, operand 0, single buffered']
    %7 = vsyncpa [#allocation3], 0
    %8 = vsyncpa [#allocation4], 0
    // Predicated region
    $region2: #{tpu_custom_call.1} parent=1 // pred_check
      _
    $region3: #{tpu_custom_call.1} parent=1 // pred_check_branch
      %10 = sbr.rel (0) target = $region5
    $region4: #{tpu_custom_call.1} parent=1 // pred_region
      %s12 = ssub.s32 16, 16
      %13 = vsyncadd [#allocation3], %s12
      %s15 = sshll.u32 [#allocation2], 4
      %s16 = int_to_ptr.vmem [resolvable:$true] %s15
      %18 = dma.hbm_to_vmem [thread:$0]  %s0, 16, %s16, [#allocation3]
    $region5: #{tpu_custom_call.1} parent=1 // pred_fallthru
      _
    // Predicated region
    $region6: #{tpu_custom_call.1} parent=1 // pred_check
      _
    $region7: #{tpu_custom_call.1} parent=1 // pred_check_branch
      %20 = sbr.rel (0) target = $region9
    $region8: #{tpu_custom_call.1} parent=1 // pred_region
      _
    $region9: #{tpu_custom_call.1} parent=1 // pred_fallthru
      _
    // Predicated region
    $region10: #{tpu_custom_call.1} parent=1 // pred_check
      _
    $region11: #{tpu_custom_call.1} parent=1 // pred_check_branch
      %22 = sbr.rel (0) target = $region13
    $region12: #{tpu_custom_call.1} parent=1 // pred_region
      %23 = dma.done [#allocation3], 16
    $region13: #{tpu_custom_call.1} parent=1 // pred_fallthru
      _
    %s24 = smul.u32 0, 8
    %v25 = vlaneseq
    %v26 = vshrl.u32 %v25, 7
    %v27 = vmul.u32 %v26, 4
    %v28 = vstv %s24
    %v29 = vadd.s32 %v27, %v28
    %v30 = vcvt.s32.f32 %v29
    %v31 = vld [vmem:[%s1] sm:$0x1]
    %v33 = vlaneseq
    %v34 = vshrl.u32 %v33, 7
    %v35 = vsub.s32 0, %v34
    %v36 = vrot.slane %v31, %v35
    %v38 = vadd.f32 %v30, %v36
    %v39 = vld [vmem:[#allocation2] sm:$0x1]
    %v41 = vlaneseq
    %v42 = vshrl.u32 %v41, 7
    %v43 = vsub.s32 0, %v42
    %v44 = vrot.slane %v39, %v43
    %v46 = vmul.f32 %v38, %v44
    %47 = vst [vmem:[#allocation5] sm:$0x3] %v46
    // Predicated region
    $region14: #{tpu_custom_call.1} parent=1 // pred_check
      _
    $region15: #{tpu_custom_call.1} parent=1 // pred_check_branch
      %49 = sbr.rel (0) target = $region17
    $region16: #{tpu_custom_call.1} parent=1 // pred_region
      %s51 = ssub.s32 32, 32
      %52 = vsyncadd [#allocation4], %s51
      %s54 = sshll.u32 [#allocation5], 4
      %s55 = int_to_ptr.vmem [resolvable:$true] %s54
      %57 = dma.vmem_to_hbm [thread:$0]  %s55, 32, %s2, [#allocation4]
    $region17: #{tpu_custom_call.1} parent=1 // pred_fallthru
      _
    // Predicated region
    $region18: #{tpu_custom_call.1} parent=1 // pred_check
      _
    $region19: #{tpu_custom_call.1} parent=1 // pred_check_branch
      %59 = sbr.rel (0) target = $region21
    $region20: #{tpu_custom_call.1} parent=1 // pred_region
      %60 = dma.done [#allocation4], 32
    $region21: #{tpu_custom_call.1} parent=1 // pred_fallthru
      _
    %61 = vsyncpa [#allocation3], 1
    %62 = vsyncpa [#allocation4], 1

</llo_original>
